<compile_context>
chip_gen: v6e
topology: v6e:2x2x1
jax: 0.10.0
libtpu: 0.0.40
codegen_flags: <defaults>
</compile_context>

<pallas_src>
import jax
import jax.numpy as jnp
from jax.experimental import pallas as pl
from jax.experimental.pallas import tpu as pltpu


def _copy_kernel(x_ref, o_ref):
    # Identity copy of the whole VMEM tile (pure data movement; HBM-bound).
    o_ref[...] = x_ref[...]


def _round_up(a, b):
    return ((a + b - 1) // b) * b


def flatten_layer(x, *, materialize=False, target_block_bytes=4 << 20):
    """Pallas equivalent of FlattenLayer.forward: x.view(x.shape[0], -1).

    materialize=False (default): free metadata reshape, no kernel launch.
    materialize=True: produce a fresh contiguous copy via a Pallas kernel
    (falls back to the free reshape when the element count is not lane/sublane
    aligned or is too small to be worth a launch).
    """
    batch = x.shape[0]
    feat = 1
    for s in x.shape[1:]:
        feat *= s

    if not materialize:
        # Fastest possible implementation on every TPU generation: flatten of
        # a row-major tensor is a metadata-only view change in XLA.
        return x.reshape(batch, feat)

    n = batch * feat
    itemsize = x.dtype.itemsize
    lanes = 128
    # Minimum sublane multiple for packed dtypes: f32 -> 8, bf16 -> 16, int8 -> 32.
    sub = {1: 32, 2: 16, 4: 8}.get(itemsize, 8)

    if n == 0 or n % lanes != 0:
        return x.reshape(batch, feat)
    rows = n // lanes
    if rows < sub or rows % sub != 0:
        # Too small / misaligned for a clean lane-dense slab; a kernel launch
        # would be pure overhead here anyway.
        return x.reshape(batch, feat)

    # Pick grid steps: ~target_block_bytes per block (default 4 MiB), at least
    # 8 steps on large slabs (even split across v7x's two TensorCores), and
    # block rows a multiple of `sub` so every block (tail included) is a full
    # packed tile -> unmasked vst.
    target_rows = max(sub, target_block_bytes // (lanes * itemsize))
    steps = max(1, pl.cdiv(rows, target_rows))
    if rows >= 8 * sub:
        steps = max(steps, 8)
    steps = min(steps, rows // sub)
    tr = min(rows, _round_up(pl.cdiv(rows, steps), sub))
    grid = (pl.cdiv(rows, tr),)

    slab = x.reshape(rows, lanes)  # contiguous view, no extra HBM pass

    out = pl.pallas_call(
        _copy_kernel,
        out_shape=jax.ShapeDtypeStruct((rows, lanes), x.dtype),
        grid_spec=pltpu.PrefetchScalarGridSpec(
            num_scalar_prefetch=0,
            grid=grid,
            in_specs=[pl.BlockSpec((tr, lanes), lambda i: (i, 0))],
            out_specs=pl.BlockSpec((tr, lanes), lambda i: (i, 0)),
        ),
        compiler_params=pltpu.CompilerParams(
            dimension_semantics=("parallel",),
            # Explicit limit: v5e's scoped default is only 16 MiB; 32 MiB
            # gives 2x headroom over the 16 MiB double-buffered footprint and
            # stays inside v7x's 64 MiB physical VMEM.
            vmem_limit_bytes=32 * 1024 * 1024,
        ),
        cost_estimate=pl.CostEstimate(
            flops=0, transcendentals=0, bytes_accessed=2 * n * itemsize
        ),
    )(slab)

    # Row-major contiguous: this reshape is a free metadata change.
    return out.reshape(batch, feat)


if __name__ == "__main__":
    key = jax.random.PRNGKey(0)
    # Small NCHW input consistent with the PyTorch module's usage.
    x = jax.random.normal(key, (2, 4, 16, 16), dtype=jnp.float32)
    ref = x.reshape(x.shape[0], -1)

    # Default path: metadata-only reshape, no kernel launch (the highest-value
    # optimization from the review).
    y_fast = jax.block_until_ready(flatten_layer(x))
    assert y_fast.shape == (2, 4 * 16 * 16) and y_fast.dtype == x.dtype
    assert jnp.array_equal(y_fast, ref), "mismatch vs reference flatten (fast path)"

    # Materialized-copy path: exercises the Pallas kernel once.
    y_copy = jax.block_until_ready(flatten_layer(x, materialize=True))
    assert y_copy.shape == (2, 4 * 16 * 16) and y_copy.dtype == x.dtype
    assert jnp.array_equal(y_copy, ref), "mismatch vs reference flatten (pallas path)"

    print("KERNEL_OK")
</pallas_src>

<mosaic_0001>
module attributes {stable_mosaic.version = 11 : i64} {
  func.func @_copy_kernel(%arg0: i32, %arg1: memref<16x128xf32, #tpu.memory_space<vmem>>, %arg2: memref<16x128xf32, #tpu.memory_space<vmem>>) attributes {dimension_semantics = [#tpu.dimension_semantics<parallel>], iteration_bounds = array<i64: 1>, scalar_prefetch = 0 : i64, scratch_operands = 0 : i64, tpu.core_type = #tpu.core_type<tc>, window_params = [{transform_indices = @transform_0, window_bounds = array<i64: 16, 128>}, {transform_indices = @transform_1, window_bounds = array<i64: 16, 128>}]} {
    %c0 = arith.constant 0 : index
    %c0_0 = arith.constant 0 : index
    %0 = vector.load %arg1[%c0, %c0_0] : memref<16x128xf32, #tpu.memory_space<vmem>>, vector<16x128xf32>
    %c0_1 = arith.constant 0 : index
    %c0_2 = arith.constant 0 : index
    %1 = vector.load %arg2[%c0_1, %c0_2] : memref<16x128xf32, #tpu.memory_space<vmem>>, vector<16x128xf32>
    tpu.vector_store %arg2[%c0_1, %c0_2], %0 {strides = array<i32>} : memref<16x128xf32, #tpu.memory_space<vmem>>, vector<16x128xf32>,
    return
  }
  func.func @transform_0(%arg0: i32) -> (i32, i32) {
    %c0_i32 = arith.constant 0 : i32
    %c0_i32_0 = arith.constant 0 : i32
    return %arg0, %c0_i32 : i32, i32
  }
  func.func @transform_1(%arg0: i32) -> (i32, i32) {
    %c0_i32 = arith.constant 0 : i32
    %c0_i32_0 = arith.constant 0 : i32
    return %arg0, %c0_i32 : i32, i32
  }
}

</mosaic_0001>

<llo_original>
// kernel: tpu_custom_call.1
$region0: #{tpu_custom_call.1}
  #allocation0 [shape = 'u32[]', space=smem, size = 0x4, offset = 0x4, fixed_abs, tag = 'smem constant byte address 0x4 - core index']
  #allocation1 [shape = 'u32[144,128]{1,0:T(1,128)}', space=vmem, size = 0x12000, scoped, tag = 'internal scratch']
  %s0 = inlined_call_operand.hbm [shape: f32[16,128], index: 0, kind: input, shape index: {}]
  %s1 = inlined_call_operand.hbm [shape: f32[16,128], index: 1, kind: output, shape index: {}]
  %s2 = sld [smem:[#allocation0]]
  $region18: #{tpu_custom_call.1} parent=0
    _
  %s4 = ssub.s32 1, %s2
  %s5 = scalar_select 0, %s4, %s2
  $region1: #{tpu_custom_call.1} parent=0
    #allocation2 [shape = 'u8[8192]{0}', space=vmem, size = 0x2000, scoped, tag = 'input window, operand 0, single buffered']
    #allocation3 [shape = 's32[1]{0}', space=sflag, size = 0x4, scoped, tag = 'scoped memory for tpu_custom_call.1']
    #allocation4 [shape = 's32[1]{0}', space=sflag, size = 0x4, scoped, tag = 'scoped memory for tpu_custom_call.1']
    #allocation5 [shape = 'u8[8192]{0}', space=vmem, size = 0x2000, scoped, tag = 'output window, operand 0, single buffered']
    %6 = vsyncpa [#allocation3], 0
    %7 = vsyncpa [#allocation4], 0
    // Predicated region
    $region2: #{tpu_custom_call.1} parent=1 // pred_check
      _
    $region3: #{tpu_custom_call.1} parent=1 // pred_check_branch
      %9 = sbr.rel (0) target = $region5
    $region4: #{tpu_custom_call.1} parent=1 // pred_region
      %s11 = ssub.s32 256, 256
      %12 = vsyncadd [#allocation3], %s11
      %s13 = sshll.u32 [#allocation2], 4
      %s14 = int_to_ptr.vmem [resolvable:$true] %s13
      %19 = dma.hbm_to_vmem [thread:$0]  %s0, 256, %s14, [#allocation3], 128, 128, 8
    $region5: #{tpu_custom_call.1} parent=1 // pred_fallthru
      _
    // Predicated region
    $region6: #{tpu_custom_call.1} parent=1 // pred_check
      _
    $region7: #{tpu_custom_call.1} parent=1 // pred_check_branch
      %21 = sbr.rel (0) target = $region9
    $region8: #{tpu_custom_call.1} parent=1 // pred_region
      %22 = dma.done [#allocation3], 256
    $region9: #{tpu_custom_call.1} parent=1 // pred_fallthru
      _
    %v23 = vld [vmem:[#allocation2] sm:$0xff]
    %v24 = vld [vmem:[#allocation2 + $0x8] sm:$0xff]
    %25 = vst [vmem:[#allocation5] sm:$0xff] %v23
    %26 = vst [vmem:[#allocation5 + $0x8] sm:$0xff] %v24
    // Predicated region
    $region10: #{tpu_custom_call.1} parent=1 // pred_check
      _
    $region11: #{tpu_custom_call.1} parent=1 // pred_check_branch
      %28 = sbr.rel (0) target = $region13
    $region12: #{tpu_custom_call.1} parent=1 // pred_region
      %s30 = ssub.s32 256, 256
      %31 = vsyncadd [#allocation4], %s30
      %s32 = sshll.u32 [#allocation5], 4
      %s33 = int_to_ptr.vmem [resolvable:$true] %s32
      %38 = dma.vmem_to_hbm [thread:$0]  %s33, 256, %s1, [#allocation4], 128, 128, 8
    $region13: #{tpu_custom_call.1} parent=1 // pred_fallthru
      _
    // Predicated region
    $region14: #{tpu_custom_call.1} parent=1 // pred_check
      _
    $region15: #{tpu_custom_call.1} parent=1 // pred_check_branch
      %40 = sbr.rel (0) target = $region17
    $region16: #{tpu_custom_call.1} parent=1 // pred_region
      %41 = dma.done [#allocation4], 256
    $region17: #{tpu_custom_call.1} parent=1 // pred_fallthru
      _
    %42 = vsyncpa [#allocation3], 1
    %43 = vsyncpa [#allocation4], 1

</llo_original>
